<compile_context>
chip_gen: v7x
topology: tpu7x:2x2x1
jax: 0.10.0
libtpu: 0.0.40
codegen_flags: <defaults>
</compile_context>

<pallas_src>
import jax
import jax.numpy as jnp
from jax.experimental import pallas as pl
from jax.experimental.pallas import tpu as pltpu


def _scalar_mul_kernel(w_ref, x_ref, o_ref):
    # w_ref: (1,) f32 scalar in SMEM.  x_ref / o_ref: (tile_r, lane) VMEM tiles.
    w = w_ref[0]
    o_ref[...] = (x_ref[...].astype(jnp.float32) * w).astype(o_ref.dtype)


def _choose_layout(n_elems: int, itemsize: int):
    """Pick (lane, rows, tile_rows) for a flattened length n_elems."""
    # Lane width: widest lane-dense slab (multiple of 128) dividing the length.
    lane = 128
    for cand in (1024, 512, 256, 128):
        if n_elems % cand == 0:
            lane = cand
            break
    rows = n_elems // lane

    # Sublane packing factor for the dtype (f32: 8, bf16: 16, int8/fp8: 32).
    pack = {4: 8, 2: 16, 1: 32}.get(itemsize, 8)

    # Target ~2 MiB (f32) per block so in+out double-buffering stays ~8 MiB,
    # comfortably inside scoped-VMEM defaults on v5e / v6e / v7x.
    target_rows = max(pack, ((512 * 1024) // lane // pack) * pack)
    if rows <= target_rows:
        if rows > pack and rows % pack:
            tile_r = (rows // pack) * pack  # aligned block; ragged tail masked
        else:
            tile_r = rows                   # full-extent block (tiny inputs)
    else:
        tile_r = target_rows
    return lane, rows, tile_r


def scalar_mul(x: jax.Array, weight: jax.Array) -> jax.Array:
    """Computes weight * x (weight has shape (1, 1)), like my_scalar_model."""
    orig_shape = x.shape
    out_dtype = jnp.promote_types(x.dtype, weight.dtype)

    if x.size == 0:
        return jnp.zeros(orig_shape, dtype=out_dtype)

    flat = x.reshape(-1)
    n = flat.shape[0]

    # Rare ragged-tail path: only when total size is not a multiple of 128.
    # Aligned inputs (the common case, incl. the demo) take zero extra passes.
    pad = (-n) % 128
    if pad:
        flat = jnp.pad(flat, (0, pad))
    m = flat.shape[0]

    lane, rows, tile_r = _choose_layout(m, jnp.dtype(x.dtype).itemsize)
    x2d = flat.reshape(rows, lane)
    grid = (pl.cdiv(rows, tile_r),)

    out2d = pl.pallas_call(
        _scalar_mul_kernel,
        out_shape=jax.ShapeDtypeStruct((rows, lane), out_dtype),
        grid_spec=pltpu.PrefetchScalarGridSpec(
            num_scalar_prefetch=0,
            grid=grid,
            in_specs=[
                pl.BlockSpec(memory_space=pltpu.SMEM),            # weight (1,)
                pl.BlockSpec((tile_r, lane), lambda i: (i, 0)),   # x tile
            ],
            out_specs=pl.BlockSpec((tile_r, lane), lambda i: (i, 0)),
        ),
        compiler_params=pltpu.CompilerParams(
            # Row tiles are independent -> shard across both TCs on v7x;
            # ~neutral on single-TC v5e/v6e.
            dimension_semantics=("parallel",),
        ),
    )(weight.reshape(-1).astype(jnp.float32), x2d)

    out_flat = out2d.reshape(-1)
    if pad:
        out_flat = out_flat[:n]
    return out_flat.reshape(orig_shape)


if __name__ == "__main__":
    key = jax.random.PRNGKey(0)

    # Small NCHW input consistent with the module's forward (any shape works).
    x = jax.random.normal(key, (2, 4, 16, 16), dtype=jnp.float32)
    # Parameter init mirrors reset_parameters(): constant 1.0, shape (1, 1).
    weight = jnp.full((1, 1), 1.0, dtype=jnp.float32)

    out = scalar_mul(x, weight)
    jax.block_until_ready(out)

    ref = weight * x
    assert out.shape == ref.shape and out.dtype == ref.dtype
    assert jnp.allclose(out, ref, atol=1e-6), "mismatch vs reference (small)"

    # Larger input to exercise the multi-block, pipelined, parallel-grid path.
    x2 = jax.random.normal(jax.random.PRNGKey(1), (2, 16, 256, 256),
                           dtype=jnp.float32)
    w2 = jnp.full((1, 1), 0.5, dtype=jnp.float32)
    out2 = scalar_mul(x2, w2)
    jax.block_until_ready(out2)
    assert jnp.allclose(out2, w2 * x2, atol=1e-6), "mismatch vs reference (tiled)"

    print("KERNEL_OK")
</pallas_src>

<mosaic_0001>
module attributes {stable_mosaic.version = 11 : i64} {
  func.func @_scalar_mul_kernel(%arg0: i32, %arg1: memref<1xf32, #tpu.memory_space<smem>>, %arg2: memref<2x1024xf32, #tpu.memory_space<vmem>>, %arg3: memref<2x1024xf32, #tpu.memory_space<vmem>>) attributes {dimension_semantics = [#tpu.dimension_semantics<parallel>], iteration_bounds = array<i64: 1>, scalar_prefetch = 0 : i64, scratch_operands = 0 : i64, tpu.core_type = #tpu.core_type<tc>, window_params = [{transform_indices = @transform_0, window_bounds = array<i64: 1>}, {transform_indices = @transform_1, window_bounds = array<i64: 2, 1024>}, {transform_indices = @transform_2, window_bounds = array<i64: 2, 1024>}]} {
    %c0 = arith.constant 0 : index
    %0 = memref.load %arg1[%c0] : memref<1xf32, #tpu.memory_space<smem>>
    %c0_0 = arith.constant 0 : index
    %c0_1 = arith.constant 0 : index
    %1 = vector.load %arg2[%c0_0, %c0_1] : memref<2x1024xf32, #tpu.memory_space<vmem>>, vector<2x1024xf32>
    %2 = vector.broadcast %0 : f32 to vector<2x1024xf32>
    %3 = arith.mulf %1, %2 : vector<2x1024xf32>
    %c0_2 = arith.constant 0 : index
    %c0_3 = arith.constant 0 : index
    %4 = vector.load %arg3[%c0_2, %c0_3] : memref<2x1024xf32, #tpu.memory_space<vmem>>, vector<2x1024xf32>
    tpu.vector_store %arg3[%c0_2, %c0_3], %3 {strides = array<i32>} : memref<2x1024xf32, #tpu.memory_space<vmem>>, vector<2x1024xf32>,
    return
  }
  func.func @transform_0(%arg0: i32) -> i32 {
    %c0_i32 = arith.constant 0 : i32
    %c0_i32_0 = arith.constant 0 : i32
    return %c0_i32 : i32
  }
  func.func @transform_1(%arg0: i32) -> (i32, i32) {
    %c0_i32 = arith.constant 0 : i32
    %c0_i32_0 = arith.constant 0 : i32
    return %arg0, %c0_i32 : i32, i32
  }
  func.func @transform_2(%arg0: i32) -> (i32, i32) {
    %c0_i32 = arith.constant 0 : i32
    %c0_i32_0 = arith.constant 0 : i32
    return %arg0, %c0_i32 : i32, i32
  }
}

</mosaic_0001>

<llo_original>
// kernel: tpu_custom_call.1
$region0: #{tpu_custom_call.1}
  #allocation0 [shape = 'u32[]', space=smem, size = 0x4, offset = 0x4, fixed_abs, tag = 'smem constant byte address 0x4 - core index']
  #allocation1 [shape = 'u32[144,128]{1,0:T(1,128)}', space=vmem, size = 0x12000, scoped, tag = 'internal scratch']
  #allocation2 [shape = 'f32[1]{0:T(128)S(6)}', space=smem, size = 0x200, scoped, tag = 'scoped memory for tpu_custom_call.1']
  %s0 = inlined_call_operand.<no memory space> [shape: f32[1], index: 0, kind: input, shape index: {}]
  %s1 = inlined_call_operand.hbm [shape: f32[2,1024], index: 1, kind: input, shape index: {}]
  %s2 = inlined_call_operand.hbm [shape: f32[2,1024], index: 2, kind: output, shape index: {}]
  %s3 = sld [smem:[#allocation0]]
  $region22: #{tpu_custom_call.1} parent=0
    _
  %s5 = ssub.s32 1, %s3
  %s6 = scalar_select 0, %s5, %s3
  %7 = sst [smem:[#allocation2]] %s0
  $region1: #{tpu_custom_call.1} parent=0
    #allocation3 [shape = 'u8[8192]{0}', space=vmem, size = 0x2000, scoped, tag = 'input window, operand 1, single buffered']
    #allocation4 [shape = 's32[1]{0}', space=sflag, size = 0x4, scoped, tag = 'scoped memory for tpu_custom_call.1']
    #allocation5 [shape = 's32[1]{0}', space=sflag, size = 0x4, scoped, tag = 'scoped memory for tpu_custom_call.1']
    #allocation6 [shape = 'u8[8192]{0}', space=vmem, size = 0x2000, scoped, tag = 'output window, operand 0, single buffered']
    %8 = vsyncpa [#allocation4], 0
    %9 = vsyncpa [#allocation5], 0
    // Predicated region
    $region2: #{tpu_custom_call.1} parent=1 // pred_check
      _
    $region3: #{tpu_custom_call.1} parent=1 // pred_check_branch
      %11 = sbr.rel (0) target = $region5
    $region4: #{tpu_custom_call.1} parent=1 // pred_region
      _
    $region5: #{tpu_custom_call.1} parent=1 // pred_fallthru
      _
    // Predicated region
    $region6: #{tpu_custom_call.1} parent=1 // pred_check
      _
    $region7: #{tpu_custom_call.1} parent=1 // pred_check_branch
      %13 = sbr.rel (0) target = $region9
    $region8: #{tpu_custom_call.1} parent=1 // pred_region
      %s15 = ssub.s32 256, 256
      %16 = vsyncadd [#allocation4], %s15
      %s18 = sshll.u32 [#allocation3], 4
      %s19 = int_to_ptr.vmem [resolvable:$true] %s18
      %21 = dma.hbm_to_vmem [thread:$0]  %s1, 256, %s19, [#allocation4]
    $region9: #{tpu_custom_call.1} parent=1 // pred_fallthru
      _
    // Predicated region
    $region10: #{tpu_custom_call.1} parent=1 // pred_check
      _
    $region11: #{tpu_custom_call.1} parent=1 // pred_check_branch
      %23 = sbr.rel (0) target = $region13
    $region12: #{tpu_custom_call.1} parent=1 // pred_region
      %24 = dma.done [#allocation4], 256
    $region13: #{tpu_custom_call.1} parent=1 // pred_fallthru
      _
    %s25 = sld [smem:[#allocation2]]
    %v26 = vld [vmem:[#allocation3] sm:$0xff]
    %v27 = vld [vmem:[#allocation3 + $0x8] sm:$0xff]
    %v28 = vstv %s25
    %v29 = vmul.f32 %v26, %v28
    %v30 = vmul.f32 %v27, %v28
    %31 = vst [vmem:[#allocation6] sm:$0xff] %v29
    %32 = vst [vmem:[#allocation6 + $0x8] sm:$0xff] %v30
    // Predicated region
    $region14: #{tpu_custom_call.1} parent=1 // pred_check
      _
    $region15: #{tpu_custom_call.1} parent=1 // pred_check_branch
      %34 = sbr.rel (0) target = $region17
    $region16: #{tpu_custom_call.1} parent=1 // pred_region
      %s36 = ssub.s32 256, 256
      %37 = vsyncadd [#allocation5], %s36
      %s39 = sshll.u32 [#allocation6], 4
      %s40 = int_to_ptr.vmem [resolvable:$true] %s39
      %42 = dma.vmem_to_hbm [thread:$0]  %s40, 256, %s2, [#allocation5]
    $region17: #{tpu_custom_call.1} parent=1 // pred_fallthru
      _
    // Predicated region
    $region18: #{tpu_custom_call.1} parent=1 // pred_check
      _
    $region19: #{tpu_custom_call.1} parent=1 // pred_check_branch
      %44 = sbr.rel (0) target = $region21
    $region20: #{tpu_custom_call.1} parent=1 // pred_region
      %45 = dma.done [#allocation5], 256
    $region21: #{tpu_custom_call.1} parent=1 // pred_fallthru
      _
    %46 = vsyncpa [#allocation4], 1
    %47 = vsyncpa [#allocation5], 1

</llo_original>
